<compile_context>
chip_gen: v5e
topology: v5e:2x2
jax: 0.10.0
libtpu: 0.0.40
codegen_flags: <defaults>
</compile_context>

<pallas_src>
import functools

import jax
import jax.numpy as jnp
from jax.experimental import pallas as pl
from jax.experimental.pallas import tpu as pltpu

_H1_PAD = 128   # fc1 out (100 -> 128): (8,128)-tile / MXU aligned
_H2_PAD = 128   # fc2 out (50  -> 128)
_H3_PAD = 128   # fc3 matmul width; only the first out_size lanes are real


def _classifier_kernel(x_ref, w1_ref, b1_ref, w2_ref, b2_ref, w3_ref, b3_ref,
                       out_ref):
    out_cols = out_ref.shape[1]          # true output_size (static)
    x = x_ref[...]                       # (tb, latent) f32

    # fc1 + LeakyReLU(0.2): bf16 MXU operands, f32 accumulate + f32 elementwise
    h1 = jnp.dot(x.astype(jnp.bfloat16), w1_ref[...],
                 preferred_element_type=jnp.float32) + b1_ref[...]
    h1 = jnp.where(h1 >= 0.0, h1, 0.2 * h1)

    # fc2 + LeakyReLU(0.2)
    h2 = jnp.dot(h1.astype(jnp.bfloat16), w2_ref[...],
                 preferred_element_type=jnp.float32) + b2_ref[...]
    h2 = jnp.where(h2 >= 0.0, h2, 0.2 * h2)

    # fc3 (padded-to-128 matmul), then exact sigmoid on the real columns only
    h3 = jnp.dot(h2.astype(jnp.bfloat16), w3_ref[...],
                 preferred_element_type=jnp.float32) + b3_ref[...]
    logits = h3[:, :out_cols]
    out_ref[...] = (1.0 / (1.0 + jnp.exp(-logits))).astype(out_ref.dtype)


def _round_up(v, m):
    return ((v + m - 1) // m) * m


def classifier_forward(x, params, *, tile_b=2048):
    """x: (B, latent_size) float32. params: padded dict from init_params."""
    w1, b1 = params["w1"], params["b1"]
    w2, b2 = params["w2"], params["b2"]
    w3, b3 = params["w3"], params["b3"]
    out_size = params["out_size"]

    B, latent = x.shape

    # Batch tile: multiple of 8 sublanes, large enough that DMA dominates the
    # per-grid-step overhead, but clamped so the grid has >= 2 steps whenever
    # B allows it (so the "parallel" axis shards across both v7x TensorCores).
    if B >= 16:
        tb = min(_round_up(tile_b, 8), _round_up(pl.cdiv(B, 2), 8))
    else:
        tb = 8
    grid = pl.cdiv(B, tb)   # ragged B: Pallas clips the final partial block

    const2d = lambda arr: pl.BlockSpec(arr.shape, lambda i: (0, 0))

    weight_bytes = ((w1.size + w2.size + w3.size) * 2 +
                    (b1.size + b2.size + b3.size) * 4)
    cost = pl.CostEstimate(
        flops=2 * B * (latent * _H1_PAD + _H1_PAD * _H2_PAD + _H2_PAD * _H3_PAD),
        transcendentals=B * out_size,
        bytes_accessed=B * (latent + out_size) * 4 + weight_bytes,
    )

    return pl.pallas_call(
        _classifier_kernel,
        out_shape=jax.ShapeDtypeStruct((B, out_size), jnp.float32),
        grid_spec=pl.GridSpec(
            grid=(grid,),
            in_specs=[
                pl.BlockSpec((tb, latent), lambda i: (i, 0)),   # x, tiled over B
                const2d(w1), const2d(b1),                       # weights stay VMEM-resident
                const2d(w2), const2d(b2),
                const2d(w3), const2d(b3),
            ],
            # Narrow (B, out_size) output: full-row blocks -> contiguous HBM
            # writeback, no 128-wide padding traffic, no wrapper-side slice.
            out_specs=pl.BlockSpec((tb, out_size), lambda i: (i, 0)),
        ),
        compiler_params=pltpu.CompilerParams(
            dimension_semantics=("parallel",),   # shard batch tiles across TCs
        ),
        cost_estimate=cost,
    )(x, w1, b1, w2, b2, w3, b3)


def init_params(key, latent_size, output_size):
    """PyTorch-style Linear init U(-1/sqrt(fan_in), 1/sqrt(fan_in)),
    zero-padded to 128-wide feature dims; weights cast to bf16."""
    dims = [(latent_size, 100), (100, 50), (50, output_size)]
    padded_dims = [(latent_size, _H1_PAD),
                   (_H1_PAD, _H2_PAD),
                   (_H2_PAD, _H3_PAD)]
    params = {"out_size": output_size}
    for i, ((fan_in, fan_out), (pi, po)) in enumerate(zip(dims, padded_dims), 1):
        key, kw, kb = jax.random.split(key, 3)
        bound = 1.0 / jnp.sqrt(jnp.float32(fan_in))
        w = jax.random.uniform(kw, (fan_in, fan_out), jnp.float32, -bound, bound)
        b = jax.random.uniform(kb, (1, fan_out), jnp.float32, -bound, bound)
        w = jnp.pad(w, ((0, pi - fan_in), (0, po - fan_out)))
        b = jnp.pad(b, ((0, 0), (0, po - fan_out)))
        params[f"w{i}"] = w.astype(jnp.bfloat16)   # MXU-native operand dtype
        params[f"b{i}"] = b                        # bias stays f32
    return params


def _reference_forward(x, params):
    """Plain-JAX reference using the same padded bf16 weights / f32 math."""
    h1 = jnp.dot(x.astype(jnp.bfloat16), params["w1"],
                 preferred_element_type=jnp.float32) + params["b1"]
    h1 = jnp.where(h1 >= 0, h1, 0.2 * h1)
    h2 = jnp.dot(h1.astype(jnp.bfloat16), params["w2"],
                 preferred_element_type=jnp.float32) + params["b2"]
    h2 = jnp.where(h2 >= 0, h2, 0.2 * h2)
    h3 = jnp.dot(h2.astype(jnp.bfloat16), params["w3"],
                 preferred_element_type=jnp.float32) + params["b3"]
    return jax.nn.sigmoid(h3)[:, :params["out_size"]]


if __name__ == "__main__":
    latent_size = 32
    output_size = 4
    batch = 32          # auto tile clamp -> tb=16, grid=2 (exercises pipelining)

    key = jax.random.PRNGKey(0)
    key, kx = jax.random.split(key)
    x = jax.random.normal(kx, (batch, latent_size), jnp.float32)
    params = init_params(key, latent_size, output_size)

    out = jax.block_until_ready(classifier_forward(x, params))

    ref = _reference_forward(x, params)
    assert out.shape == (batch, output_size)
    # bf16 matmul operands -> loosened tolerance vs the f32 reference math.
    assert jnp.allclose(out, ref, atol=1e-2, rtol=1e-2), "mismatch vs reference"

    print("KERNEL_OK")
</pallas_src>

<mosaic_0001>
module attributes {stable_mosaic.version = 11 : i64} {
  func.func @_classifier_kernel(%arg0: i32, %arg1: memref<16x32xf32, #tpu.memory_space<vmem>>, %arg2: memref<32x128xbf16, #tpu.memory_space<vmem>>, %arg3: memref<1x128xf32, #tpu.memory_space<vmem>>, %arg4: memref<128x128xbf16, #tpu.memory_space<vmem>>, %arg5: memref<1x128xf32, #tpu.memory_space<vmem>>, %arg6: memref<128x128xbf16, #tpu.memory_space<vmem>>, %arg7: memref<1x128xf32, #tpu.memory_space<vmem>>, %arg8: memref<16x4xf32, #tpu.memory_space<vmem>>) attributes {dimension_semantics = [#tpu.dimension_semantics<parallel>], iteration_bounds = array<i64: 2>, scalar_prefetch = 0 : i64, scratch_operands = 0 : i64, tpu.core_type = #tpu.core_type<tc>, window_params = [{transform_indices = @transform_0, window_bounds = array<i64: 16, 32>}, {pipeline_mode = #tpu.pipeline_mode<synchronous>, transform_indices = @transform_1, window_bounds = array<i64: 32, 128>}, {pipeline_mode = #tpu.pipeline_mode<synchronous>, transform_indices = @transform_2, window_bounds = array<i64: 1, 128>}, {pipeline_mode = #tpu.pipeline_mode<synchronous>, transform_indices = @transform_3, window_bounds = array<i64: 128, 128>}, {pipeline_mode = #tpu.pipeline_mode<synchronous>, transform_indices = @transform_4, window_bounds = array<i64: 1, 128>}, {pipeline_mode = #tpu.pipeline_mode<synchronous>, transform_indices = @transform_5, window_bounds = array<i64: 128, 128>}, {pipeline_mode = #tpu.pipeline_mode<synchronous>, transform_indices = @transform_6, window_bounds = array<i64: 1, 128>}, {transform_indices = @transform_7, window_bounds = array<i64: 16, 4>}]} {
    %c0 = arith.constant 0 : index
    %c0_0 = arith.constant 0 : index
    %0 = vector.load %arg1[%c0, %c0_0] : memref<16x32xf32, #tpu.memory_space<vmem>>, vector<16x32xf32>
    %1 = arith.truncf %0 : vector<16x32xf32> to vector<16x32xbf16>
    %c0_1 = arith.constant 0 : index
    %c0_2 = arith.constant 0 : index
    %2 = vector.load %arg2[%c0_1, %c0_2] : memref<32x128xbf16, #tpu.memory_space<vmem>>, vector<32x128xbf16>
    %cst = arith.constant dense<0.000000e+00> : vector<16x128xf32>
    %3 = tpu.matmul %1, %2, %cst {dimension_numbers = #tpu.dot_dimension_numbers<[1], [0], [0], [1], [0, 0, 1, 1], [], []>} : vector<16x32xbf16>, vector<32x128xbf16>, vector<16x128xf32> -> vector<16x128xf32>
    %c0_3 = arith.constant 0 : index
    %c0_4 = arith.constant 0 : index
    %4 = vector.load %arg3[%c0_3, %c0_4] : memref<1x128xf32, #tpu.memory_space<vmem>>, vector<1x128xf32>
    %5 = vector.broadcast %4 : vector<1x128xf32> to vector<16x128xf32>
    %6 = arith.addf %3, %5 : vector<16x128xf32>
    %cst_5 = arith.constant 0.000000e+00 : f32
    %7 = vector.broadcast %cst_5 : f32 to vector<16x128xf32>
    %8 = arith.cmpf oge, %6, %7 : vector<16x128xf32>
    %cst_6 = arith.constant 2.000000e-01 : f32
    %9 = vector.broadcast %cst_6 : f32 to vector<16x128xf32>
    %10 = arith.mulf %9, %6 : vector<16x128xf32>
    %11 = arith.select %8, %6, %10 : vector<16x128xi1>, vector<16x128xf32>
    %12 = arith.truncf %11 : vector<16x128xf32> to vector<16x128xbf16>
    %c0_7 = arith.constant 0 : index
    %c0_8 = arith.constant 0 : index
    %13 = vector.load %arg4[%c0_7, %c0_8] : memref<128x128xbf16, #tpu.memory_space<vmem>>, vector<128x128xbf16>
    %cst_9 = arith.constant dense<0.000000e+00> : vector<16x128xf32>
    %14 = tpu.matmul %12, %13, %cst_9 {dimension_numbers = #tpu.dot_dimension_numbers<[1], [0], [0], [1], [0, 0, 1, 1], [], []>} : vector<16x128xbf16>, vector<128x128xbf16>, vector<16x128xf32> -> vector<16x128xf32>
    %c0_10 = arith.constant 0 : index
    %c0_11 = arith.constant 0 : index
    %15 = vector.load %arg5[%c0_10, %c0_11] : memref<1x128xf32, #tpu.memory_space<vmem>>, vector<1x128xf32>
    %16 = vector.broadcast %15 : vector<1x128xf32> to vector<16x128xf32>
    %17 = arith.addf %14, %16 : vector<16x128xf32>
    %cst_12 = arith.constant 0.000000e+00 : f32
    %18 = vector.broadcast %cst_12 : f32 to vector<16x128xf32>
    %19 = arith.cmpf oge, %17, %18 : vector<16x128xf32>
    %cst_13 = arith.constant 2.000000e-01 : f32
    %20 = vector.broadcast %cst_13 : f32 to vector<16x128xf32>
    %21 = arith.mulf %20, %17 : vector<16x128xf32>
    %22 = arith.select %19, %17, %21 : vector<16x128xi1>, vector<16x128xf32>
    %23 = arith.truncf %22 : vector<16x128xf32> to vector<16x128xbf16>
    %c0_14 = arith.constant 0 : index
    %c0_15 = arith.constant 0 : index
    %24 = vector.load %arg6[%c0_14, %c0_15] : memref<128x128xbf16, #tpu.memory_space<vmem>>, vector<128x128xbf16>
    %cst_16 = arith.constant dense<0.000000e+00> : vector<16x128xf32>
    %25 = tpu.matmul %23, %24, %cst_16 {dimension_numbers = #tpu.dot_dimension_numbers<[1], [0], [0], [1], [0, 0, 1, 1], [], []>} : vector<16x128xbf16>, vector<128x128xbf16>, vector<16x128xf32> -> vector<16x128xf32>
    %c0_17 = arith.constant 0 : index
    %c0_18 = arith.constant 0 : index
    %26 = vector.load %arg7[%c0_17, %c0_18] : memref<1x128xf32, #tpu.memory_space<vmem>>, vector<1x128xf32>
    %27 = vector.broadcast %26 : vector<1x128xf32> to vector<16x128xf32>
    %28 = arith.addf %25, %27 : vector<16x128xf32>
    %29 = vector.extract_strided_slice %28 {offsets = [0, 0], sizes = [16, 4], strides = [1, 1]} : vector<16x128xf32> to vector<16x4xf32>
    %cst_19 = arith.constant 0.000000e+00 : f32
    %30 = vector.broadcast %cst_19 : f32 to vector<16x4xf32>
    %31 = arith.subf %30, %29 : vector<16x4xf32>
    %32 = math.exp %31 : vector<16x4xf32>
    %cst_20 = arith.constant 1.000000e+00 : f32
    %33 = vector.broadcast %cst_20 : f32 to vector<16x4xf32>
    %34 = arith.addf %33, %32 : vector<16x4xf32>
    %cst_21 = arith.constant 1.000000e+00 : f32
    %35 = vector.broadcast %cst_21 : f32 to vector<16x4xf32>
    %36 = arith.divf %35, %34 : vector<16x4xf32>
    %c0_22 = arith.constant 0 : index
    %c0_23 = arith.constant 0 : index
    %37 = vector.load %arg8[%c0_22, %c0_23] : memref<16x4xf32, #tpu.memory_space<vmem>>, vector<16x4xf32>
    tpu.vector_store %arg8[%c0_22, %c0_23], %36 {strides = array<i32>} : memref<16x4xf32, #tpu.memory_space<vmem>>, vector<16x4xf32>,
    return
  }
  func.func @transform_0(%arg0: i32) -> (i32, i32) {
    %c0_i32 = arith.constant 0 : i32
    %c0_i32_0 = arith.constant 0 : i32
    return %arg0, %c0_i32 : i32, i32
  }
  func.func @transform_1(%arg0: i32) -> (i32, i32) {
    %c0_i32 = arith.constant 0 : i32
    %c0_i32_0 = arith.constant 0 : i32
    %c0_i32_1 = arith.constant 0 : i32
    return %c0_i32, %c0_i32_0 : i32, i32
  }
  func.func @transform_2(%arg0: i32) -> (i32, i32) {
    %c0_i32 = arith.constant 0 : i32
    %c0_i32_0 = arith.constant 0 : i32
    %c0_i32_1 = arith.constant 0 : i32
    return %c0_i32, %c0_i32_0 : i32, i32
  }
  func.func @transform_3(%arg0: i32) -> (i32, i32) {
    %c0_i32 = arith.constant 0 : i32
    %c0_i32_0 = arith.constant 0 : i32
    %c0_i32_1 = arith.constant 0 : i32
    return %c0_i32, %c0_i32_0 : i32, i32
  }
  func.func @transform_4(%arg0: i32) -> (i32, i32) {
    %c0_i32 = arith.constant 0 : i32
    %c0_i32_0 = arith.constant 0 : i32
    %c0_i32_1 = arith.constant 0 : i32
    return %c0_i32, %c0_i32_0 : i32, i32
  }
  func.func @transform_5(%arg0: i32) -> (i32, i32) {
    %c0_i32 = arith.constant 0 : i32
    %c0_i32_0 = arith.constant 0 : i32
    %c0_i32_1 = arith.constant 0 : i32
    return %c0_i32, %c0_i32_0 : i32, i32
  }
  func.func @transform_6(%arg0: i32) -> (i32, i32) {
    %c0_i32 = arith.constant 0 : i32
    %c0_i32_0 = arith.constant 0 : i32
    %c0_i32_1 = arith.constant 0 : i32
    return %c0_i32, %c0_i32_0 : i32, i32
  }
  func.func @transform_7(%arg0: i32) -> (i32, i32) {
    %c0_i32 = arith.constant 0 : i32
    %c0_i32_0 = arith.constant 0 : i32
    return %arg0, %c0_i32 : i32, i32
  }
}

</mosaic_0001>

<llo_original>
// kernel: tpu_custom_call.1
$region0: #{tpu_custom_call.1}
  #allocation0 [shape = 'u32[]', space=smem, size = 0x4, offset = 0x4, fixed_abs, tag = 'smem constant byte address 0x4 - core index']
  #allocation1 [shape = 'u32[72,128]{1,0:T(1,128)}', space=vmem, size = 0x9000, scoped, tag = 'internal scratch']
  %s0 = inlined_call_operand.hbm [shape: f32[32,32], index: 0, kind: input, shape index: {}]
  %s1 = inlined_call_operand.hbm [shape: bf16[32,128], index: 1, kind: input, shape index: {}]
  %s2 = inlined_call_operand.vmem [shape: f32[1,128], index: 2, kind: input, shape index: {}]
  %s3 = inlined_call_operand.hbm [shape: bf16[128,128], index: 3, kind: input, shape index: {}]
  %s4 = inlined_call_operand.vmem [shape: f32[1,128], index: 4, kind: input, shape index: {}]
  %s5 = inlined_call_operand.hbm [shape: bf16[128,128], index: 5, kind: input, shape index: {}]
  %s6 = inlined_call_operand.vmem [shape: f32[1,128], index: 6, kind: input, shape index: {}]
  %s7 = inlined_call_operand.vmem [shape: f32[32,4], index: 7, kind: output, shape index: {}]
  %s8 = sld [smem:[#allocation0]]
  $region77: #{tpu_custom_call.1} parent=0
    _
  %s10 = ssub.s32 1, %s8
  %s11 = scalar_select 0, %s10, %s8
  $region1: #{tpu_custom_call.1} parent=0
    #allocation2 [shape = 'u8[16384]{0}', space=vmem, size = 0x4000, scoped, tag = 'input window, operand 0']
    #allocation3 [shape = 's32[2]{0}', space=sflag, size = 0x8, scoped, tag = 'scoped memory for tpu_custom_call.1']
    #allocation4 [shape = 'u8[8192]{0}', space=vmem, size = 0x2000, scoped, tag = 'input window, operand 1, single buffered']
    #allocation5 [shape = 's32[1]{0}', space=sflag, size = 0x4, scoped, tag = 'scoped memory for tpu_custom_call.1']
    #allocation6 [shape = 'u8[32768]{0}', space=vmem, size = 0x8000, scoped, tag = 'input window, operand 3, single buffered']
    #allocation7 [shape = 'u8[32768]{0}', space=vmem, size = 0x8000, scoped, tag = 'input window, operand 5, single buffered']
    #allocation8 [shape = 's32[1]{0}', space=sflag, size = 0x4, scoped, tag = 'scoped memory for tpu_custom_call.1']
    %12 = vsyncpa [#allocation3], 0
    %s13 = scalar_lea.sflag [#allocation3], 1
    %14 = vsyncpa %s13, 0
    %15 = vsyncpa [#allocation5], 0
    %16 = vsyncpa [#allocation8], 0
    loop: start=0, step=1, limit=4
    $region2: #{tpu_custom_call.1} parent=1 // loop_pre_header
      _
    $region3: #{tpu_custom_call.1} parent=1 // loop_header
      %s18 = sphi 0, %s22
      %p19 = scmp.ge.s32.totalorder %s18, 4
      %s28 = sphi 0, %s30
      %s31 = sphi 0, %s28
      %s32 = sphi 0, %s31
      %s48 = sphi 0, %s32
      %s52 = sphi 0, %s52
      %s54 = sphi 0, %s52
      %s55 = sphi 0, %s54
      %s69 = sphi 0, %s55
      %s73 = sphi 0, %s73
      %s75 = sphi 0, %s73
      %s76 = sphi 0, %s75
      %s90 = sphi 0, %s76
      %s94 = sphi 0, %s94
      %s96 = sphi 0, %s94
      %s97 = sphi 0, %s96
      %s111 = sphi 0, %s97
      %s115 = sphi 0, %s115
      %s117 = sphi 0, %s115
      %s118 = sphi 0, %s117
      %s132 = sphi 0, %s118
      %s136 = sphi 0, %s136
      %s138 = sphi 0, %s136
      %s139 = sphi 0, %s138
      %s153 = sphi 0, %s139
      %s157 = sphi 0, %s157
      %s159 = sphi 0, %s157
      %s160 = sphi 0, %s159
      %s174 = sphi 0, %s160
      %s180 = sphi 0, %s182
      %s183 = sphi 0, %s180
      %s184 = sphi 0, %s183
      %s200 = sphi 0, %s184
    $region4: #{tpu_custom_call.1} parent=1 // loop_header_branch
      %21 = sbr.rel (%p19) target = $region8
    $region5: #{tpu_custom_call.1} parent=1 // loop_body
      %s23 = ssub.s32 %s18, 1
      %s24 = ssub.s32 %s18, 2
      %s25 = sadd.s32 %s18, 1
      %s26 = ssub.s32 %s18, %s25
      %p27 = scmp.eq.s32.totalorder %s26, 0
      %s29 = sadd.s32 %s28, 1
      %s30 = scalar_select %p27, %s28, %s29
      %p33 = pneg %p27
      %p34 = scmp.eq.s32.totalorder %s18, 1
      %p35 = por %p33, %p34
      %p36 = scmp.ne.s32.totalorder %s28, %s31
      %p37 = scmp.eq.s32.totalorder %s18, 0
      %p38 = por %p36, %p37
      %p39 = scmp.ne.s32.totalorder %s28, %s31
      %p40 = scmp.eq.s32.totalorder %s23, 1
      %p41 = por %p39, %p40
      %p42 = scmp.ne.s32.totalorder %s31, %s32
      %p43 = scmp.eq.s32.totalorder %s23, 0
      %p44 = por %p42, %p43
      %p45 = scmp.ne.s32.totalorder %s31, %s32
      %p46 = scmp.eq.s32.totalorder %s24, 1
      %p47 = por %p45, %p46
      %p49 = scmp.ne.s32.totalorder %s32, %s48
      %p50 = scmp.eq.s32.totalorder %s24, 0
      %p51 = por %p49, %p50
      %s53 = sadd.s32 %s52, 1
      %p56 = scmp.eq.s32.totalorder %s18, 1
      %p57 = scmp.ne.s32.totalorder %s52, %s54
      %p58 = scmp.eq.s32.totalorder %s18, 0
      %p59 = por %p57, %p58
      %p60 = scmp.ne.s32.totalorder %s52, %s54
      %p61 = scmp.eq.s32.totalorder %s23, 1
      %p62 = por %p60, %p61
      %p63 = scmp.ne.s32.totalorder %s54, %s55
      %p64 = scmp.eq.s32.totalorder %s23, 0
      %p65 = por %p63, %p64
      %p66 = scmp.ne.s32.totalorder %s54, %s55
      %p67 = scmp.eq.s32.totalorder %s24, 1
      %p68 = por %p66, %p67
      %p70 = scmp.ne.s32.totalorder %s55, %s69
      %p71 = scmp.eq.s32.totalorder %s24, 0
      %p72 = por %p70, %p71
      %s74 = sadd.s32 %s73, 1
      %p77 = scmp.eq.s32.totalorder %s18, 1
      %p78 = scmp.ne.s32.totalorder %s73, %s75
      %p79 = scmp.eq.s32.totalorder %s18, 0
      %p80 = por %p78, %p79
      %p81 = scmp.ne.s32.totalorder %s73, %s75
      %p82 = scmp.eq.s32.totalorder %s23, 1
      %p83 = por %p81, %p82
      %p84 = scmp.ne.s32.totalorder %s75, %s76
      %p85 = scmp.eq.s32.totalorder %s23, 0
      %p86 = por %p84, %p85
      %p87 = scmp.ne.s32.totalorder %s75, %s76
      %p88 = scmp.eq.s32.totalorder %s24, 1
      %p89 = por %p87, %p88
      %p91 = scmp.ne.s32.totalorder %s76, %s90
      %p92 = scmp.eq.s32.totalorder %s24, 0
      %p93 = por %p91, %p92
      %s95 = sadd.s32 %s94, 1
      %p98 = scmp.eq.s32.totalorder %s18, 1
      %p99 = scmp.ne.s32.totalorder %s94, %s96
      %p100 = scmp.eq.s32.totalorder %s18, 0
      %p101 = por %p99, %p100
      %p102 = scmp.ne.s32.totalorder %s94, %s96
      %p103 = scmp.eq.s32.totalorder %s23, 1
      %p104 = por %p102, %p103
      %p105 = scmp.ne.s32.totalorder %s96, %s97
      %p106 = scmp.eq.s32.totalorder %s23, 0
      %p107 = por %p105, %p106
      %p108 = scmp.ne.s32.totalorder %s96, %s97
      %p109 = scmp.eq.s32.totalorder %s24, 1
      %p110 = por %p108, %p109
      %p112 = scmp.ne.s32.totalorder %s97, %s111
      %p113 = scmp.eq.s32.totalorder %s24, 0
      %p114 = por %p112, %p113
      %s116 = sadd.s32 %s115, 1
      %p119 = scmp.eq.s32.totalorder %s18, 1
      %p120 = scmp.ne.s32.totalorder %s115, %s117
      %p121 = scmp.eq.s32.totalorder %s18, 0
      %p122 = por %p120, %p121
      %p123 = scmp.ne.s32.totalorder %s115, %s117
      %p124 = scmp.eq.s32.totalorder %s23, 1
      %p125 = por %p123, %p124
      %p126 = scmp.ne.s32.totalorder %s117, %s118
      %p127 = scmp.eq.s32.totalorder %s23, 0
      %p128 = por %p126, %p127
      %p129 = scmp.ne.s32.totalorder %s117, %s118
      %p130 = scmp.eq.s32.totalorder %s24, 1
      %p131 = por %p129, %p130
      %p133 = scmp.ne.s32.totalorder %s118, %s132
      %p134 = scmp.eq.s32.totalorder %s24, 0
      %p135 = por %p133, %p134
      %s137 = sadd.s32 %s136, 1
      %p140 = scmp.eq.s32.totalorder %s18, 1
      %p141 = scmp.ne.s32.totalorder %s136, %s138
      %p142 = scmp.eq.s32.totalorder %s18, 0
      %p143 = por %p141, %p142
      %p144 = scmp.ne.s32.totalorder %s136, %s138
      %p145 = scmp.eq.s32.totalorder %s23, 1
      %p146 = por %p144, %p145
      %p147 = scmp.ne.s32.totalorder %s138, %s139
      %p148 = scmp.eq.s32.totalorder %s23, 0
      %p149 = por %p147, %p148
      %p150 = scmp.ne.s32.totalorder %s138, %s139
      %p151 = scmp.eq.s32.totalorder %s24, 1
      %p152 = por %p150, %p151
      %p154 = scmp.ne.s32.totalorder %s139, %s153
      %p155 = scmp.eq.s32.totalorder %s24, 0
      %p156 = por %p154, %p155
      %s158 = sadd.s32 %s157, 1
      %p161 = scmp.eq.s32.totalorder %s18, 1
      %p162 = scmp.ne.s32.totalorder %s157, %s159
      %p163 = scmp.eq.s32.totalorder %s18, 0
      %p164 = por %p162, %p163
      %p165 = scmp.ne.s32.totalorder %s157, %s159
      %p166 = scmp.eq.s32.totalorder %s23, 1
      %p167 = por %p165, %p166
      %p168 = scmp.ne.s32.totalorder %s159, %s160
      %p169 = scmp.eq.s32.totalorder %s23, 0
      %p170 = por %p168, %p169
      %p171 = scmp.ne.s32.totalorder %s159, %s160
      %p172 = scmp.eq.s32.totalorder %s24, 1
      %p173 = por %p171, %p172
      %p175 = scmp.ne.s32.totalorder %s160, %s174
      %p176 = scmp.eq.s32.totalorder %s24, 0
      %p177 = por %p175, %p176
      %s178 = ssub.s32 %s18, %s25
      %p179 = scmp.eq.s32.totalorder %s178, 0
      %s181 = sadd.s32 %s180, 1
      %s182 = scalar_select %p179, %s180, %s181
      %p185 = pneg %p179
      %p186 = scmp.eq.s32.totalorder %s18, 1
      %p187 = por %p185, %p186
      %p188 = scmp.ne.s32.totalorder %s180, %s183
      %p189 = scmp.eq.s32.totalorder %s18, 0
      %p190 = por %p188, %p189
      %p191 = scmp.ne.s32.totalorder %s180, %s183
      %p192 = scmp.eq.s32.totalorder %s23, 1
      %p193 = por %p191, %p192
      %p194 = scmp.ne.s32.totalorder %s183, %s184
      %p195 = scmp.eq.s32.totalorder %s23, 0
      %p196 = por %p194, %p195
      %p197 = scmp.ne.s32.totalorder %s183, %s184
      %p198 = scmp.eq.s32.totalorder %s24, 1
      %p199 = por %p197, %p198
      %p201 = scmp.ne.s32.totalorder %s184, %s200
      %p202 = scmp.eq.s32.totalorder %s24, 0
      %p203 = por %p201, %p202
      %p204 = scmp.le.s32.totalorder 1, %s18
      %p205 = scmp.lt.s32.totalorder %s18, 3
      %p206 = pnand %p204, %p205
      %p207 = pneg %p206
      // Predicated region
      $region9: #{tpu_custom_call.1} parent=5 // pred_check
        _
      $region10: #{tpu_custom_call.1} parent=5 // pred_check_branch
        %209 = sbr.rel (%p206) target = $region12
      $region11: #{tpu_custom_call.1} parent=5 // pred_region
        %s210 = ssub.s32 %s18, 1
        // Predicated region
        $region13: #{tpu_custom_call.1} parent=11 // pred_check
          %p211 = pneg %p65
        $region14: #{tpu_custom_call.1} parent=11 // pred_check_branch
          %213 = sbr.rel (%p211) target = $region16
        $region15: #{tpu_custom_call.1} parent=11 // pred_region
          %215 = vsyncadd [#allocation5], 0
          %s216 = sshll.u32 %s1, 4
          %s217 = int_to_ptr.hbm [resolvable:$true] %s216
          %s218 = sshll.u32 [#allocation4], 4
          %s219 = int_to_ptr.vmem [resolvable:$true] %s218
          %224 = dma.hbm_to_vmem [thread:$0]  %s217, 256, %s219, [#allocation5], 64, 64, 4
        $region16: #{tpu_custom_call.1} parent=11 // pred_fallthru
          _
        // Predicated region
        $region17: #{tpu_custom_call.1} parent=11 // pred_check
          %p225 = pneg %p86
        $region18: #{tpu_custom_call.1} parent=11 // pred_check_branch
          %227 = sbr.rel (%p225) target = $region20
        $region19: #{tpu_custom_call.1} parent=11 // pred_region
          _
        $region20: #{tpu_custom_call.1} parent=11 // pred_fallthru
          _
        // Predicated region
        $region21: #{tpu_custom_call.1} parent=11 // pred_check
          %p228 = pneg %p107
        $region22: #{tpu_custom_call.1} parent=11 // pred_check_branch
          %230 = sbr.rel (%p228) target = $region24
        $region23: #{tpu_custom_call.1} parent=11 // pred_region
          %232 = vsyncadd [#allocation5], 0
          %s233 = sshll.u32 %s3, 4
          %s234 = int_to_ptr.hbm [resolvable:$true] %s233
          %s235 = sshll.u32 [#allocation6], 4
          %s236 = int_to_ptr.vmem [resolvable:$true] %s235
          %241 = dma.hbm_to_vmem [thread:$0]  %s234, 1024, %s236, [#allocation5], 64, 64, 4
        $region24: #{tpu_custom_call.1} parent=11 // pred_fallthru
          _
        // Predicated region
        $region25: #{tpu_custom_call.1} parent=11 // pred_check
          %p242 = pneg %p128
        $region26: #{tpu_custom_call.1} parent=11 // pred_check_branch
          %244 = sbr.rel (%p242) target = $region28
        $region27: #{tpu_custom_call.1} parent=11 // pred_region
          _
        $region28: #{tpu_custom_call.1} parent=11 // pred_fallthru
          _
        // Predicated region
        $region29: #{tpu_custom_call.1} parent=11 // pred_check
          %p245 = pneg %p149
        $region30: #{tpu_custom_call.1} parent=11 // pred_check_branch
          %247 = sbr.rel (%p245) target = $region32
        $region31: #{tpu_custom_call.1} parent=11 // pred_region
          %249 = vsyncadd [#allocation8], 0
          %s250 = sshll.u32 %s5, 4
          %s251 = int_to_ptr.hbm [resolvable:$true] %s250
          %s252 = sshll.u32 [#allocation7], 4
          %s253 = int_to_ptr.vmem [resolvable:$true] %s252
          %258 = dma.hbm_to_vmem [thread:$0]  %s251, 1024, %s253, [#allocation8], 64, 64, 4
        $region32: #{tpu_custom_call.1} parent=11 // pred_fallthru
          _
        // Predicated region
        $region33: #{tpu_custom_call.1} parent=11 // pred_check
          %p259 = pneg %p170
        $region34: #{tpu_custom_call.1} parent=11 // pred_check_branch
          %261 = sbr.rel (%p259) target = $region36
        $region35: #{tpu_custom_call.1} parent=11 // pred_region
          _
        $region36: #{tpu_custom_call.1} parent=11 // pred_fallthru
          _
      $region12: #{tpu_custom_call.1} parent=5 // pred_fallthru
        _
      %p262 = scmp.lt.s32.totalorder %s18, 2
      // Predicated region
      $region37: #{tpu_custom_call.1} parent=5 // pred_check
        %p263 = pneg %p262
      $region38: #{tpu_custom_call.1} parent=5 // pred_check_branch
        %265 = sbr.rel (%p263) target = $region40
      $region39: #{tpu_custom_call.1} parent=5 // pred_region
        // Predicated region
        $region41: #{tpu_custom_call.1} parent=39 // pred_check
          %p266 = pneg %p38
        $region42: #{tpu_custom_call.1} parent=39 // pred_check_branch
          %268 = sbr.rel (%p266) target = $region44
        $region43: #{tpu_custom_call.1} parent=39 // pred_region
          %s269 = sand.u32 %s28, 1
          %s270 = scalar_lea.sflag [#allocation3], %s269
          %s271 = sand.u32 %s28, 1
          %s272 = smul.addr %s271, 16
          %s273 = scalar_lea.vmem [#allocation2], %s272
          %s274 = smul.u32 2, %s18
          %276 = vsyncadd %s270, 0
          %s277 = smul.addr %s274, 8
          %s278 = scalar_lea.hbm %s0, %s277
          %s279 = sshll.u32 %s278, 4
          %s280 = int_to_ptr.hbm [resolvable:$true] %s279
          %s281 = sshll.u32 %s273, 4
          %s282 = int_to_ptr.vmem [resolvable:$true] %s281
          %287 = dma.hbm_to_vmem [thread:$0]  %s280, 256, %s282, %s270, 128, 128, 8
        $region44: #{tpu_custom_call.1} parent=39 // pred_fallthru
          _
      $region40: #{tpu_custom_call.1} parent=5 // pred_fallthru
        _
      %p288 = scmp.le.s32.totalorder 1, %s18
      %p289 = scmp.lt.s32.totalorder %s18, 3
      %p290 = pnand %p288, %p289
      %p291 = pneg %p290
      // Predicated region
      $region45: #{tpu_custom_call.1} parent=5 // pred_check
        _
      $region46: #{tpu_custom_call.1} parent=5 // pred_check_branch
        %293 = sbr.rel (%p290) target = $region48
      $region47: #{tpu_custom_call.1} parent=5 // pred_region
        %s294 = ssub.s32 %s18, 1
        %s295 = sand.u32 %s31, 1
        %s296 = scalar_lea.sflag [#allocation3], %s295
        %s297 = sand.u32 %s31, 1
        %s298 = smul.addr %s297, 16
        %s299 = scalar_lea.vmem [#allocation2], %s298
        // Predicated region
        $region49: #{tpu_custom_call.1} parent=47 // pred_check
          %p300 = pneg %p44
        $region50: #{tpu_custom_call.1} parent=47 // pred_check_branch
          %302 = sbr.rel (%p300) target = $region52
        $region51: #{tpu_custom_call.1} parent=47 // pred_region
          %304 = dma.done %s296, 256
        $region52: #{tpu_custom_call.1} parent=47 // pred_fallthru
          _
        // Predicated region
        $region53: #{tpu_custom_call.1} parent=47 // pred_check
          %p305 = pneg %p65
        $region54: #{tpu_custom_call.1} parent=47 // pred_check_branch
          %307 = sbr.rel (%p305) target = $region56
        $region55: #{tpu_custom_call.1} parent=47 // pred_region
          %309 = dma.done [#allocation5], 256
        $region56: #{tpu_custom_call.1} parent=47 // pred_fallthru
          _
        // Predicated region
        $region57: #{tpu_custom_call.1} parent=47 // pred_check
          %p310 = pneg %p107
        $region58: #{tpu_custom_call.1} parent=47 // pred_check_branch
          %312 = sbr.rel (%p310) target = $region60
        $region59: #{tpu_custom_call.1} parent=47 // pred_region
          %314 = dma.done [#allocation5], 1024
        $region60: #{tpu_custom_call.1} parent=47 // pred_fallthru
          _
        // Predicated region
        $region61: #{tpu_custom_call.1} parent=47 // pred_check
          %p315 = pneg %p149
        $region62: #{tpu_custom_call.1} parent=47 // pred_check_branch
          %317 = sbr.rel (%p315) target = $region64
        $region63: #{tpu_custom_call.1} parent=47 // pred_region
          %319 = dma.done [#allocation8], 1024
        $region64: #{tpu_custom_call.1} parent=47 // pred_fallthru
          _
        %s320 = sand.u32 %s31, 1
        %s321 = scalar_lea.sflag [#allocation3], %s320
        %s322 = sand.u32 %s31, 1
        %s323 = smul.addr %s322, 16
        %s324 = scalar_lea.vmem [#allocation2], %s323
        %p325 = pneg %p44
        %p326 = pneg %p41
        %p327 = pneg %p65
        %p328 = pneg %p62
        %p329 = pneg %p86
        %p330 = pneg %p83
        %p331 = pneg %p107
        %p332 = pneg %p104
        %p333 = pneg %p128
        %p334 = pneg %p125
        %p335 = pneg %p149
        %p336 = pneg %p146
        %p337 = pneg %p170
        %p338 = pneg %p167
        %p339 = pneg %p196
        %p340 = pneg %p193
        %s341 = smul.u32 2, %s23
        %p342 = scmp.lt.s32.totalorder %s341, 3
        %s343 = scalar_select %p342, %s341, 3
        %s344 = smul.addr %s343, 8
        %s345 = scalar_lea.vmem %s7, %s344
        %s346 = smul.u32 2, %s23
        %s347 = smul.u32 2, %s23
        %p348 = scmp.lt.s32.totalorder %s347, 3
        %s349 = scalar_select %p348, %s347, 3
        %s350 = smul.addr %s349, 8
        %s351 = scalar_lea.vmem %s7, %s350
        %s352 = smul.u32 2, %s23
        %v354 = vld [vmem:[%s299] sm:$0xff]
        %v355 = vld [vmem:[%s299 + $0x8] sm:$0xff]
        %v356 = vpack.c.bf16 %v355, %v354
        %v357 = vld [vmem:[#allocation4] sm:$0xf]
        %v358 = vld [vmem:[#allocation4 + $0x4] sm:$0xf]
        %v359 = vld [vmem:[#allocation4 + $0x8] sm:$0xf]
        %v360 = vld [vmem:[#allocation4 + $0xc] sm:$0xf]
        %v361 = vld [vmem:[%s2] sm:$0x1]
        %v363 = vperm.slane %v361, 0
        %v369 = vunpack.c.l.b16 %v357
        %v370 = vunpack.c.l.b16 %v358
        %v371 = vunpack.c.l.b16 %v359
        %v372 = vunpack.c.l.b16 %v360
        %v373 = vpack.c.b16 %v370, %v369
        %v374 = vpack.c.b16 %v372, %v371
        %vm377 = vcmask 261120
        %v379 = vsel %vm377, %v356, 0
        %381 = vmatpush.bf16.msra.mxu0 0
        %382 = vmatpush.bf16.msra.mxu0 0
        %383 = vmatpush.bf16.msra.mxu0 0
        %384 = vmatpush.bf16.msra.mxu0 0
        %385 = vmatpush.bf16.msra.mxu0 0
        %386 = vmatpush.bf16.msra.mxu0 0
        %387 = vmatpush.bf16.msra.mxu0 %v374
        %388 = vmatpush.bf16.msra.mxu0 %v373
        %389 = vmatmul.bf16.gmra.mxu0 %v379
        %v390 = vpop.f32.mrf.mxu0
        %v391 = vadd.f32 %v363, %v390
        %v392 = vpop.f32.mrf.mxu0
        %v393 = vadd.f32 %v363, %v392
        %394 = vdwg.mxu0
        %vm395 = vcmp.ge.f32.partialorder %v391, 0.0
        %vm396 = vcmp.ge.f32.partialorder %v393, 0.0
        %v397 = vmul.f32 %v391, 0.2
        %v398 = vmul.f32 %v393, 0.2
        %v399 = vsel %vm395, %v391, %v397
        %v400 = vsel %vm396, %v393, %v398
        %v401 = vpack.c.bf16 %v400, %v399
        %v402 = vld [vmem:[#allocation6] sm:$0xf]
        %v403 = vld [vmem:[#allocation6 + $0x4] sm:$0xf]
        %v404 = vld [vmem:[#allocation6 + $0x8] sm:$0xf]
        %v405 = vld [vmem:[#allocation6 + $0xc] sm:$0xf]
        %v406 = vld [vmem:[#allocation6 + $0x10] sm:$0xf]
        %v407 = vld [vmem:[#allocation6 + $0x14] sm:$0xf]
        %v408 = vld [vmem:[#allocation6 + $0x18] sm:$0xf]
        %v409 = vld [vmem:[#allocation6 + $0x1c] sm:$0xf]
        %v410 = vld [vmem:[#allocation6 + $0x20] sm:$0xf]
        %v411 = vld [vmem:[#allocation6 + $0x24] sm:$0xf]
        %v412 = vld [vmem:[#allocation6 + $0x28] sm:$0xf]
        %v413 = vld [vmem:[#allocation6 + $0x2c] sm:$0xf]
        %v414 = vld [vmem:[#allocation6 + $0x30] sm:$0xf]
        %v415 = vld [vmem:[#allocation6 + $0x34] sm:$0xf]
        %v416 = vld [vmem:[#allocation6 + $0x38] sm:$0xf]
        %v417 = vld [vmem:[#allocation6 + $0x3c] sm:$0xf]
        %v418 = vld [vmem:[%s4] sm:$0x1]
        %v420 = vperm.slane %v418, 0
        %v438 = vunpack.c.l.b16 %v402
        %v439 = vunpack.c.l.b16 %v403
        %v440 = vunpack.c.l.b16 %v404
        %v441 = vunpack.c.l.b16 %v405
        %v442 = vunpack.c.l.b16 %v406
        %v443 = vunpack.c.l.b16 %v407
        %v444 = vunpack.c.l.b16 %v408
        %v445 = vunpack.c.l.b16 %v409
        %v446 = vunpack.c.l.b16 %v410
        %v447 = vunpack.c.l.b16 %v411
        %v448 = vunpack.c.l.b16 %v412
        %v449 = vunpack.c.l.b16 %v413
        %v450 = vunpack.c.l.b16 %v414
        %v451 = vunpack.c.l.b16 %v415
        %v452 = vunpack.c.l.b16 %v416
        %v453 = vunpack.c.l.b16 %v417
        %v454 = vpack.c.b16 %v439, %v438
        %v455 = vpack.c.b16 %v441, %v440
        %v456 = vpack.c.b16 %v443, %v442
        %v457 = vpack.c.b16 %v445, %v444
        %v458 = vpack.c.b16 %v447, %v446
        %v459 = vpack.c.b16 %v449, %v448
        %v460 = vpack.c.b16 %v451, %v450
        %v461 = vpack.c.b16 %v453, %v452
        %470 = vmatpush.bf16.msra.mxu0 %v461
        %471 = vmatpush.bf16.msra.mxu0 %v460
        %472 = vmatpush.bf16.msra.mxu0 %v459
        %473 = vmatpush.bf16.msra.mxu0 %v458
        %474 = vmatpush.bf16.msra.mxu0 %v457
        %475 = vmatpush.bf16.msra.mxu0 %v456
        %476 = vmatpush.bf16.msra.mxu0 %v455
        %477 = vmatpush.bf16.msra.mxu0 %v454
        %478 = vmatmul.bf16.gmra.mxu0 %v401
        %v479 = vpop.f32.mrf.mxu0
        %v480 = vadd.f32 %v420, %v479
        %v481 = vpop.f32.mrf.mxu0
        %v482 = vadd.f32 %v420, %v481
        %483 = vdwg.mxu0
        %vm484 = vcmp.ge.f32.partialorder %v480, 0.0
        %vm485 = vcmp.ge.f32.partialorder %v482, 0.0
        %v486 = vmul.f32 %v480, 0.2
        %v487 = vmul.f32 %v482, 0.2
        %v488 = vsel %vm484, %v480, %v486
        %v489 = vsel %vm485, %v482, %v487
        %v490 = vpack.c.bf16 %v489, %v488
        %v491 = vld [vmem:[#allocation7] sm:$0xf]
        %v492 = vld [vmem:[#allocation7 + $0x4] sm:$0xf]
        %v493 = vld [vmem:[#allocation7 + $0x8] sm:$0xf]
        %v494 = vld [vmem:[#allocation7 + $0xc] sm:$0xf]
        %v495 = vld [vmem:[#allocation7 + $0x10] sm:$0xf]
        %v496 = vld [vmem:[#allocation7 + $0x14] sm:$0xf]
        %v497 = vld [vmem:[#allocation7 + $0x18] sm:$0xf]
        %v498 = vld [vmem:[#allocation7 + $0x1c] sm:$0xf]
        %v499 = vld [vmem:[#allocation7 + $0x20] sm:$0xf]
        %v500 = vld [vmem:[#allocation7 + $0x24] sm:$0xf]
        %v501 = vld [vmem:[#allocation7 + $0x28] sm:$0xf]
        %v502 = vld [vmem:[#allocation7 + $0x2c] sm:$0xf]
        %v503 = vld [vmem:[#allocation7 + $0x30] sm:$0xf]
        %v504 = vld [vmem:[#allocation7 + $0x34] sm:$0xf]
        %v505 = vld [vmem:[#allocation7 + $0x38] sm:$0xf]
        %v506 = vld [vmem:[#allocation7 + $0x3c] sm:$0xf]
        %v507 = vld [vmem:[%s6] sm:$0x1]
        %v509 = vperm.slane %v507, 0
        %v527 = vunpack.c.l.b16 %v491
        %v528 = vunpack.c.l.b16 %v492
        %v529 = vunpack.c.l.b16 %v493
        %v530 = vunpack.c.l.b16 %v494
        %v531 = vunpack.c.l.b16 %v495
        %v532 = vunpack.c.l.b16 %v496
        %v533 = vunpack.c.l.b16 %v497
        %v534 = vunpack.c.l.b16 %v498
        %v535 = vunpack.c.l.b16 %v499
        %v536 = vunpack.c.l.b16 %v500
        %v537 = vunpack.c.l.b16 %v501
        %v538 = vunpack.c.l.b16 %v502
        %v539 = vunpack.c.l.b16 %v503
        %v540 = vunpack.c.l.b16 %v504
        %v541 = vunpack.c.l.b16 %v505
        %v542 = vunpack.c.l.b16 %v506
        %v543 = vpack.c.b16 %v528, %v527
        %v544 = vpack.c.b16 %v530, %v529
        %v545 = vpack.c.b16 %v532, %v531
        %v546 = vpack.c.b16 %v534, %v533
        %v547 = vpack.c.b16 %v536, %v535
        %v548 = vpack.c.b16 %v538, %v537
        %v549 = vpack.c.b16 %v540, %v539
        %v550 = vpack.c.b16 %v542, %v541
        %559 = vmatpush.bf16.msra.mxu0 %v550
        %560 = vmatpush.bf16.msra.mxu0 %v549
        %561 = vmatpush.bf16.msra.mxu0 %v548
        %562 = vmatpush.bf16.msra.mxu0 %v547
        %563 = vmatpush.bf16.msra.mxu0 %v546
        %564 = vmatpush.bf16.msra.mxu0 %v545
        %565 = vmatpush.bf16.msra.mxu0 %v544
        %566 = vmatpush.bf16.msra.mxu0 %v543
        %567 = vmatmul.bf16.gmra.mxu0 %v490
        %v568 = vpop.f32.mrf.mxu0
        %v569 = vadd.f32 %v509, %v568
        %v570 = vpop.f32.mrf.mxu0
        %v571 = vadd.f32 %v509, %v570
        %572 = vdwg.mxu0
        %v573 = vsub.f32 0.0, %v569
        %v574 = vsub.f32 0.0, %v571
        %v575 = vmul.f32 %v573, 1.442695
        %v576 = vpow.pop %v575
        %v577 = vmul.f32 %v574, 1.442695
        %v578 = vpow.pop %v577
        %v579 = vadd.f32 %v576, 1.0
        %v580 = vadd.f32 %v578, 1.0
        %v581 = vrcp.pop %v579
        %v582 = vmul.f32 %v579, %v581
        %v583 = vsub.f32 1.0, %v582
        %v584 = vmul.f32 %v581, %v583
        %v585 = vadd.f32 %v581, %v584
        %vm586 = vweird.f32 %v579
        %vm587 = vweird.f32 %v581
        %vm588 = vmor %vm586, %vm587
        %v589 = vsel %vm588, %v581, %v585
        %v590 = vand.u32 2147483647, %v579
        %vm591 = vcmp.eq.f32.partialorder %v590, 8.507059e+37
        %v592 = vand.u32 %v579, 2147483648
        %v593 = vor.u32 1.1754944e-38, %v592
        %v594 = vsel %vm591, %v593, %v589
        %v595 = vmul.f32 1.0, %v594
        %v596 = vrcp.pop %v580
        %v597 = vmul.f32 %v580, %v596
        %v598 = vsub.f32 1.0, %v597
        %v599 = vmul.f32 %v596, %v598
        %v600 = vadd.f32 %v596, %v599
        %vm601 = vweird.f32 %v580
        %vm602 = vweird.f32 %v596
        %vm603 = vmor %vm601, %vm602
        %v604 = vsel %vm603, %v596, %v600
        %v605 = vand.u32 2147483647, %v580
        %vm606 = vcmp.eq.f32.partialorder %v605, 8.507059e+37
        %v607 = vand.u32 %v580, 2147483648
        %v608 = vor.u32 1.1754944e-38, %v607
        %v609 = vsel %vm606, %v608, %v604
        %v610 = vmul.f32 1.0, %v609
        %vm611 = vcmask 31744
        %612 = vst.msk [vmem:[%s351] sm:$0xff] %vm611, %v595
        %613 = vst.msk [vmem:[%s351 + $0x8] sm:$0xff] %vm611, %v610
        %s614 = smul.u32 2, %s23
        %p615 = scmp.lt.s32.totalorder %s614, 3
        %s616 = scalar_select %p615, %s614, 3
        %s617 = smul.addr %s616, 8
        %s618 = scalar_lea.vmem %s7, %s617
        // Predicated region
        $region65: #{tpu_custom_call.1} parent=47 // pred_check
          %p619 = pneg %p193
        $region66: #{tpu_custom_call.1} parent=47 // pred_check_branch
          %621 = sbr.rel (%p619) target = $region68
        $region67: #{tpu_custom_call.1} parent=47 // pred_region
          %s622 = smul.u32 2, %s23
        $region68: #{tpu_custom_call.1} parent=47 // pred_fallthru
          _
      $region48: #{tpu_custom_call.1} parent=5 // pred_fallthru
        _
      %p623 = scmp.le.s32.totalorder 2, %s18
      // Predicated region
      $region69: #{tpu_custom_call.1} parent=5 // pred_check
        %p624 = pneg %p623
      $region70: #{tpu_custom_call.1} parent=5 // pred_check_branch
        %626 = sbr.rel (%p624) target = $region72
      $region71: #{tpu_custom_call.1} parent=5 // pred_region
        %s627 = ssub.s32 %s18, 2
        // Predicated region
        $region73: #{tpu_custom_call.1} parent=71 // pred_check
          %p628 = pneg %p199
        $region74: #{tpu_custom_call.1} parent=71 // pred_check_branch
          %630 = sbr.rel (%p628) target = $region76
        $region75: #{tpu_custom_call.1} parent=71 // pred_region
          %s631 = smul.u32 2, %s24
          %p632 = scmp.lt.s32.totalorder %s631, 3
          %s633 = scalar_select %p632, %s631, 3
          %s634 = smul.addr %s633, 8
          %s635 = scalar_lea.vmem %s7, %s634
        $region76: #{tpu_custom_call.1} parent=71 // pred_fallthru
          _
      $region72: #{tpu_custom_call.1} parent=5 // pred_fallthru
        _
    $region6: #{tpu_custom_call.1} parent=1 // loop_footer
      %s22 = sadd.s32 1, %s18
    $region7: #{tpu_custom_call.1} parent=1 // loop_footer_branch
      %17 = sbr.rel target = $region3
    $region8: #{tpu_custom_call.1} parent=1 // loop_exit
      _
    %636 = vsyncpa [#allocation3], 1
    %s637 = scalar_lea.sflag [#allocation3], 1
    %638 = vsyncpa %s637, 1
    %639 = vsyncpa [#allocation5], 1
    %640 = vsyncpa [#allocation8], 1

</llo_original>
